<compile_context>
chip_gen: v5e
topology: v5e:2x2
jax: 0.10.0
libtpu: 0.0.40
codegen_flags: <defaults>
</compile_context>

<pallas_src>
import functools

import jax
import jax.numpy as jnp
from jax import lax
from jax.experimental import pallas as pl
from jax.experimental.pallas import tpu as pltpu

_T_SUB = 8  # timesteps per inner-loop iteration (one f32 vreg sublane tile)


def _pole_zero_kernel(x_ref, b1_ref, b2_ref, a1_ref, a2_ref, g_ref, o_ref,
                      x1_ref, x2_ref, y1_ref, y2_ref, *, num_filters, time_tile):
    # x_ref : (TL, N) VMEM   time-major input tile, lanes = flattened (B, C)
    # b*/a* : (K, N)  VMEM   per-stage, per-lane biquad coefficients (resident)
    # g_ref : (1, N)  VMEM   per-lane gain (resident)
    # o_ref : (TL, N) VMEM   output tile
    # x1/x2/y1/y2_ref : (K, N) VMEM scratch -- filter state carried across tiles
    K = num_filters
    TL = time_tile

    # Zero the carried filter state at the first time tile only.
    @pl.when(pl.program_id(0) == 0)
    def _():
        x1_ref[...] = jnp.zeros_like(x1_ref)
        x2_ref[...] = jnp.zeros_like(x2_ref)
        y1_ref[...] = jnp.zeros_like(y1_ref)
        y2_ref[...] = jnp.zeros_like(y2_ref)

    # Hoist per-stage coefficient rows (done once per tile, not per timestep).
    b1 = [b1_ref[k:k + 1, :] for k in range(K)]
    b2 = [b2_ref[k:k + 1, :] for k in range(K)]
    a1 = [a1_ref[k:k + 1, :] for k in range(K)]
    a2 = [a2_ref[k:k + 1, :] for k in range(K)]
    gain = g_ref[...]                                  # (1, N)

    # Load carried state into registers.
    init = (tuple(x1_ref[k:k + 1, :] for k in range(K)),
            tuple(x2_ref[k:k + 1, :] for k in range(K)),
            tuple(y1_ref[k:k + 1, :] for k in range(K)),
            tuple(y2_ref[k:k + 1, :] for k in range(K)))

    num_sub = TL // _T_SUB

    def body(i, carry):
        x1s, x2s, y1s, y2s = [list(c) for c in carry]
        base = pl.multiple_of(i * _T_SUB, _T_SUB)
        x_blk = x_ref[pl.ds(base, _T_SUB), :]          # (8, N) single load
        out_rows = []
        for t in range(_T_SUB):                        # fully unrolled
            xt = x_blk[t:t + 1, :]                     # (1, N)
            for k in range(K):                         # fused stage cascade
                yt = (xt + b1[k] * x1s[k] + b2[k] * x2s[k]
                      - a1[k] * y1s[k] - a2[k] * y2s[k])
                x2s[k] = x1s[k]
                x1s[k] = xt
                y2s[k] = y1s[k]
                y1s[k] = yt
                xt = yt
            out_rows.append(xt)
        # One full-width (8, N) store per 8 samples; gain folded in here.
        o_ref[pl.ds(base, _T_SUB), :] = gain * jnp.concatenate(out_rows, axis=0)
        return (tuple(x1s), tuple(x2s), tuple(y1s), tuple(y2s))

    x1s, x2s, y1s, y2s = lax.fori_loop(0, num_sub, body, init)

    # Write carried state back for the next time tile (tiny, once per tile).
    for k in range(K):
        x1_ref[k:k + 1, :] = x1s[k]
        x2_ref[k:k + 1, :] = x2s[k]
        y1_ref[k:k + 1, :] = y1s[k]
        y2_ref[k:k + 1, :] = y2s[k]


def pole_zero_filter(input_signals, log_gain, poles, zeros, *, time_tile=None):
    """input_signals: (B, C, L); log_gain: (B, 1); poles/zeros: (B, K, 2)."""
    B, C, L = input_signals.shape
    K = poles.shape[1]

    # ---- biquad coefficients (tiny, computed outside the kernel) ----
    px, py = poles[..., 0].astype(jnp.float32), poles[..., 1].astype(jnp.float32)
    zx, zy = zeros[..., 0].astype(jnp.float32), zeros[..., 1].astype(jnp.float32)
    p_rad = jnp.sqrt(px * px + py * py)                 # |p~|  (B, K)
    scale = jnp.tanh(p_rad) / (p_rad + 1e-5)            # tanh reparameterization
    a1 = -2.0 * px * scale                              # -2 Re(p) (rescaled pole)
    a2 = p_rad * p_rad                                  # |p~|^2   (ORIGINAL radii)
    b1 = -2.0 * zx                                      # -2 Re(q)
    b2 = zx * zx + zy * zy                              # |q|^2
    gain = jnp.exp(log_gain.astype(jnp.float32)).reshape(B)

    # ---- lane-dense layout: (time, B*C) padded to 128 lanes ----
    BC = B * C
    N = ((BC + 127) // 128) * 128

    if time_tile is None:
        time_tile = 128
    TL = min(int(time_tile), ((L + 7) // 8) * 8)
    TL = ((TL + _T_SUB - 1) // _T_SUB) * _T_SUB
    L_pad = ((L + TL - 1) // TL) * TL
    n_tiles = L_pad // TL

    def coef_lanes(c_bk):  # (B, K) -> (K, N), lane index = b*C + c
        c = jnp.broadcast_to(c_bk[:, None, :], (B, C, K))
        c = jnp.transpose(c, (2, 0, 1)).reshape(K, BC)
        return jnp.pad(c, ((0, 0), (0, N - BC)))

    b1l, b2l, a1l, a2l = (coef_lanes(c) for c in (b1, b2, a1, a2))
    g = jnp.broadcast_to(gain[:, None], (B, C)).reshape(1, BC)
    g = jnp.pad(g, ((0, 0), (0, N - BC)))

    x = jnp.transpose(input_signals.astype(jnp.float32), (2, 0, 1)).reshape(L, BC)
    x = jnp.pad(x, ((0, L_pad - L), (0, N - BC)))

    kernel = functools.partial(_pole_zero_kernel, num_filters=K, time_tile=TL)

    y = pl.pallas_call(
        kernel,
        out_shape=jax.ShapeDtypeStruct((L_pad, N), jnp.float32),
        grid_spec=pltpu.PrefetchScalarGridSpec(
            num_scalar_prefetch=0,
            grid=(n_tiles,),
            in_specs=[
                pl.BlockSpec((TL, N), lambda t: (t, 0)),   # input time tile
                pl.BlockSpec((K, N), lambda t: (0, 0)),    # b1 (resident)
                pl.BlockSpec((K, N), lambda t: (0, 0)),    # b2
                pl.BlockSpec((K, N), lambda t: (0, 0)),    # a1
                pl.BlockSpec((K, N), lambda t: (0, 0)),    # a2
                pl.BlockSpec((1, N), lambda t: (0, 0)),    # gain
            ],
            out_specs=pl.BlockSpec((TL, N), lambda t: (t, 0)),
            scratch_shapes=[pltpu.VMEM((K, N), jnp.float32)] * 4,
        ),
        compiler_params=pltpu.CompilerParams(
            dimension_semantics=("arbitrary",)),           # serial time recursion
    )(x, b1l, b2l, a1l, a2l, g)

    y = y[:L, :BC].reshape(L, B, C)
    return jnp.transpose(y, (1, 2, 0))                     # back to (B, C, L)


def pole_zero_filter_ref(x, log_gain, poles, zeros):
    """Pure-JAX reference (same math, lax.scan recursion)."""
    gain = jnp.exp(log_gain)                                    # (B, 1)
    p_rad = jnp.sqrt(poles[..., 0] ** 2 + poles[..., 1] ** 2)   # (B, K)
    scale = jnp.tanh(p_rad) / (p_rad + 1e-5)
    a1 = -2.0 * poles[..., 0] * scale
    a2 = p_rad ** 2
    z_rad = jnp.sqrt(zeros[..., 0] ** 2 + zeros[..., 1] ** 2)
    b1 = -2.0 * zeros[..., 0]
    b2 = z_rad ** 2

    B, C, L = x.shape
    K = poles.shape[1]
    y = x
    for k in range(K):
        def step(carry, xt, k=k):
            x1, x2, y1, y2 = carry
            yt = (xt + b1[:, k, None] * x1 + b2[:, k, None] * x2
                  - a1[:, k, None] * y1 - a2[:, k, None] * y2)
            return (xt, x1, yt, y1), yt
        zero = jnp.zeros((B, C), jnp.float32)
        _, ys = lax.scan(step, (zero, zero, zero, zero), jnp.moveaxis(y, -1, 0))
        y = jnp.moveaxis(ys, 0, -1)
    return gain[..., None] * y


if __name__ == "__main__":
    key = jax.random.PRNGKey(0)
    B, C, L, K = 2, 4, 64, 2                      # num_filters = K
    k1, k2, k3, k4 = jax.random.split(key, 4)

    input_signals = jax.random.normal(k1, (B, C, L), jnp.float32)
    log_gain = 0.1 * jax.random.normal(k2, (B, 1), jnp.float32)
    poles = 0.5 * jax.random.normal(k3, (B, K, 2), jnp.float32)
    zeros = 0.5 * jax.random.normal(k4, (B, K, 2), jnp.float32)

    # time_tile=16 exercises the multi-tile state-carry path (4 time tiles).
    out = pole_zero_filter(input_signals, log_gain, poles, zeros, time_tile=16)
    out = jax.block_until_ready(out)

    ref = pole_zero_filter_ref(input_signals, log_gain, poles, zeros)
    assert out.shape == (B, C, L)
    assert jnp.allclose(out, ref, rtol=1e-3, atol=1e-3), (
        f"max abs err = {float(jnp.max(jnp.abs(out - ref)))}")
    print("KERNEL_OK")
</pallas_src>

<mosaic_0001>
module attributes {stable_mosaic.version = 11 : i64} {
  func.func @_pole_zero_kernel(%arg0: i32, %arg1: memref<16x128xf32, #tpu.memory_space<vmem>>, %arg2: memref<2x128xf32, #tpu.memory_space<vmem>>, %arg3: memref<2x128xf32, #tpu.memory_space<vmem>>, %arg4: memref<2x128xf32, #tpu.memory_space<vmem>>, %arg5: memref<2x128xf32, #tpu.memory_space<vmem>>, %arg6: memref<1x128xf32, #tpu.memory_space<vmem>>, %arg7: memref<16x128xf32, #tpu.memory_space<vmem>>, %arg8: memref<2x128xf32, #tpu.memory_space<vmem>>, %arg9: memref<2x128xf32, #tpu.memory_space<vmem>>, %arg10: memref<2x128xf32, #tpu.memory_space<vmem>>, %arg11: memref<2x128xf32, #tpu.memory_space<vmem>>) attributes {dimension_semantics = [#tpu.dimension_semantics<arbitrary>], iteration_bounds = array<i64: 4>, scalar_prefetch = 0 : i64, scratch_operands = 4 : i64, tpu.core_type = #tpu.core_type<tc>, window_params = [{transform_indices = @transform_0, window_bounds = array<i64: 16, 128>}, {pipeline_mode = #tpu.pipeline_mode<synchronous>, transform_indices = @transform_1, window_bounds = array<i64: 2, 128>}, {pipeline_mode = #tpu.pipeline_mode<synchronous>, transform_indices = @transform_2, window_bounds = array<i64: 2, 128>}, {pipeline_mode = #tpu.pipeline_mode<synchronous>, transform_indices = @transform_3, window_bounds = array<i64: 2, 128>}, {pipeline_mode = #tpu.pipeline_mode<synchronous>, transform_indices = @transform_4, window_bounds = array<i64: 2, 128>}, {pipeline_mode = #tpu.pipeline_mode<synchronous>, transform_indices = @transform_5, window_bounds = array<i64: 1, 128>}, {transform_indices = @transform_6, window_bounds = array<i64: 16, 128>}]} {
    %c0_i32 = arith.constant 0 : i32
    %0 = arith.cmpi eq, %arg0, %c0_i32 : i32
    %1 = arith.extui %0 : i1 to i32
    %c0_i32_0 = arith.constant 0 : i32
    %2 = arith.cmpi ne, %1, %c0_i32_0 : i32
    scf.if %2 {
      %cst = arith.constant 0.000000e+00 : f32
      %30 = vector.broadcast %cst : f32 to vector<2x128xf32>
      %c0_51 = arith.constant 0 : index
      %c0_52 = arith.constant 0 : index
      %31 = vector.load %arg8[%c0_51, %c0_52] : memref<2x128xf32, #tpu.memory_space<vmem>>, vector<2x128xf32>
      tpu.vector_store %arg8[%c0_51, %c0_52], %30 {strides = array<i32>} : memref<2x128xf32, #tpu.memory_space<vmem>>, vector<2x128xf32>,
      %cst_53 = arith.constant 0.000000e+00 : f32
      %32 = vector.broadcast %cst_53 : f32 to vector<2x128xf32>
      %c0_54 = arith.constant 0 : index
      %c0_55 = arith.constant 0 : index
      %33 = vector.load %arg9[%c0_54, %c0_55] : memref<2x128xf32, #tpu.memory_space<vmem>>, vector<2x128xf32>
      tpu.vector_store %arg9[%c0_54, %c0_55], %32 {strides = array<i32>} : memref<2x128xf32, #tpu.memory_space<vmem>>, vector<2x128xf32>,
      %cst_56 = arith.constant 0.000000e+00 : f32
      %34 = vector.broadcast %cst_56 : f32 to vector<2x128xf32>
      %c0_57 = arith.constant 0 : index
      %c0_58 = arith.constant 0 : index
      %35 = vector.load %arg10[%c0_57, %c0_58] : memref<2x128xf32, #tpu.memory_space<vmem>>, vector<2x128xf32>
      tpu.vector_store %arg10[%c0_57, %c0_58], %34 {strides = array<i32>} : memref<2x128xf32, #tpu.memory_space<vmem>>, vector<2x128xf32>,
      %cst_59 = arith.constant 0.000000e+00 : f32
      %36 = vector.broadcast %cst_59 : f32 to vector<2x128xf32>
      %c0_60 = arith.constant 0 : index
      %c0_61 = arith.constant 0 : index
      %37 = vector.load %arg11[%c0_60, %c0_61] : memref<2x128xf32, #tpu.memory_space<vmem>>, vector<2x128xf32>
      tpu.vector_store %arg11[%c0_60, %c0_61], %36 {strides = array<i32>} : memref<2x128xf32, #tpu.memory_space<vmem>>, vector<2x128xf32>,
    } else {
    }
    %c0 = arith.constant 0 : index
    %c0_1 = arith.constant 0 : index
    %3 = vector.load %arg2[%c0, %c0_1] : memref<2x128xf32, #tpu.memory_space<vmem>>, vector<1x128xf32>
    %c1 = arith.constant 1 : index
    %c0_2 = arith.constant 0 : index
    %4 = vector.load %arg2[%c1, %c0_2] : memref<2x128xf32, #tpu.memory_space<vmem>>, vector<1x128xf32>
    %c0_3 = arith.constant 0 : index
    %c0_4 = arith.constant 0 : index
    %5 = vector.load %arg3[%c0_3, %c0_4] : memref<2x128xf32, #tpu.memory_space<vmem>>, vector<1x128xf32>
    %c1_5 = arith.constant 1 : index
    %c0_6 = arith.constant 0 : index
    %6 = vector.load %arg3[%c1_5, %c0_6] : memref<2x128xf32, #tpu.memory_space<vmem>>, vector<1x128xf32>
    %c0_7 = arith.constant 0 : index
    %c0_8 = arith.constant 0 : index
    %7 = vector.load %arg4[%c0_7, %c0_8] : memref<2x128xf32, #tpu.memory_space<vmem>>, vector<1x128xf32>
    %c1_9 = arith.constant 1 : index
    %c0_10 = arith.constant 0 : index
    %8 = vector.load %arg4[%c1_9, %c0_10] : memref<2x128xf32, #tpu.memory_space<vmem>>, vector<1x128xf32>
    %c0_11 = arith.constant 0 : index
    %c0_12 = arith.constant 0 : index
    %9 = vector.load %arg5[%c0_11, %c0_12] : memref<2x128xf32, #tpu.memory_space<vmem>>, vector<1x128xf32>
    %c1_13 = arith.constant 1 : index
    %c0_14 = arith.constant 0 : index
    %10 = vector.load %arg5[%c1_13, %c0_14] : memref<2x128xf32, #tpu.memory_space<vmem>>, vector<1x128xf32>
    %c0_15 = arith.constant 0 : index
    %c0_16 = arith.constant 0 : index
    %11 = vector.load %arg6[%c0_15, %c0_16] : memref<1x128xf32, #tpu.memory_space<vmem>>, vector<1x128xf32>
    %c0_17 = arith.constant 0 : index
    %c0_18 = arith.constant 0 : index
    %12 = vector.load %arg8[%c0_17, %c0_18] : memref<2x128xf32, #tpu.memory_space<vmem>>, vector<1x128xf32>
    %c1_19 = arith.constant 1 : index
    %c0_20 = arith.constant 0 : index
    %13 = vector.load %arg8[%c1_19, %c0_20] : memref<2x128xf32, #tpu.memory_space<vmem>>, vector<1x128xf32>
    %c0_21 = arith.constant 0 : index
    %c0_22 = arith.constant 0 : index
    %14 = vector.load %arg9[%c0_21, %c0_22] : memref<2x128xf32, #tpu.memory_space<vmem>>, vector<1x128xf32>
    %c1_23 = arith.constant 1 : index
    %c0_24 = arith.constant 0 : index
    %15 = vector.load %arg9[%c1_23, %c0_24] : memref<2x128xf32, #tpu.memory_space<vmem>>, vector<1x128xf32>
    %c0_25 = arith.constant 0 : index
    %c0_26 = arith.constant 0 : index
    %16 = vector.load %arg10[%c0_25, %c0_26] : memref<2x128xf32, #tpu.memory_space<vmem>>, vector<1x128xf32>
    %c1_27 = arith.constant 1 : index
    %c0_28 = arith.constant 0 : index
    %17 = vector.load %arg10[%c1_27, %c0_28] : memref<2x128xf32, #tpu.memory_space<vmem>>, vector<1x128xf32>
    %c0_29 = arith.constant 0 : index
    %c0_30 = arith.constant 0 : index
    %18 = vector.load %arg11[%c0_29, %c0_30] : memref<2x128xf32, #tpu.memory_space<vmem>>, vector<1x128xf32>
    %c1_31 = arith.constant 1 : index
    %c0_32 = arith.constant 0 : index
    %19 = vector.load %arg11[%c1_31, %c0_32] : memref<2x128xf32, #tpu.memory_space<vmem>>, vector<1x128xf32>
    %c0_i32_33 = arith.constant 0 : i32
    %c2_i32 = arith.constant 2 : i32
    %20 = arith.addi %c0_i32_33, %c2_i32 : i32
    %c1_i32 = arith.constant 1 : i32
    %21:8 = scf.for %arg12 = %c0_i32_33 to %20 step %c1_i32 iter_args(%arg13 = %12, %arg14 = %13, %arg15 = %14, %arg16 = %15, %arg17 = %16, %arg18 = %17, %arg19 = %18, %arg20 = %19) -> (vector<1x128xf32>, vector<1x128xf32>, vector<1x128xf32>, vector<1x128xf32>, vector<1x128xf32>, vector<1x128xf32>, vector<1x128xf32>, vector<1x128xf32>)  : i32 {
      %c8_i32 = arith.constant 8 : i32
      %30 = arith.muli %arg12, %c8_i32 : i32
      %31 = tpu.assume_multiple %30, 8 : i32
      %32 = arith.index_cast %31 : i32 to index
      %c0_51 = arith.constant 0 : index
      %33 = vector.load %arg1[%32, %c0_51] : memref<16x128xf32, #tpu.memory_space<vmem>>, vector<8x128xf32>
      %34 = vector.extract_strided_slice %33 {offsets = [0, 0], sizes = [1, 128], strides = [1, 1]} : vector<8x128xf32> to vector<1x128xf32>
      %35 = arith.mulf %3, %arg13 : vector<1x128xf32>
      %36 = arith.addf %34, %35 : vector<1x128xf32>
      %37 = arith.mulf %5, %arg15 : vector<1x128xf32>
      %38 = arith.addf %36, %37 : vector<1x128xf32>
      %39 = arith.mulf %7, %arg17 : vector<1x128xf32>
      %40 = arith.subf %38, %39 : vector<1x128xf32>
      %41 = arith.mulf %9, %arg19 : vector<1x128xf32>
      %42 = arith.subf %40, %41 : vector<1x128xf32>
      %43 = arith.mulf %4, %arg14 : vector<1x128xf32>
      %44 = arith.addf %42, %43 : vector<1x128xf32>
      %45 = arith.mulf %6, %arg16 : vector<1x128xf32>
      %46 = arith.addf %44, %45 : vector<1x128xf32>
      %47 = arith.mulf %8, %arg18 : vector<1x128xf32>
      %48 = arith.subf %46, %47 : vector<1x128xf32>
      %49 = arith.mulf %10, %arg20 : vector<1x128xf32>
      %50 = arith.subf %48, %49 : vector<1x128xf32>
      %51 = vector.extract_strided_slice %33 {offsets = [1, 0], sizes = [1, 128], strides = [1, 1]} : vector<8x128xf32> to vector<1x128xf32>
      %52 = arith.mulf %3, %34 : vector<1x128xf32>
      %53 = arith.addf %51, %52 : vector<1x128xf32>
      %54 = arith.mulf %5, %arg13 : vector<1x128xf32>
      %55 = arith.addf %53, %54 : vector<1x128xf32>
      %56 = arith.mulf %7, %42 : vector<1x128xf32>
      %57 = arith.subf %55, %56 : vector<1x128xf32>
      %58 = arith.mulf %9, %arg17 : vector<1x128xf32>
      %59 = arith.subf %57, %58 : vector<1x128xf32>
      %60 = arith.mulf %4, %42 : vector<1x128xf32>
      %61 = arith.addf %59, %60 : vector<1x128xf32>
      %62 = arith.mulf %6, %arg14 : vector<1x128xf32>
      %63 = arith.addf %61, %62 : vector<1x128xf32>
      %64 = arith.mulf %8, %50 : vector<1x128xf32>
      %65 = arith.subf %63, %64 : vector<1x128xf32>
      %66 = arith.mulf %10, %arg18 : vector<1x128xf32>
      %67 = arith.subf %65, %66 : vector<1x128xf32>
      %68 = vector.extract_strided_slice %33 {offsets = [2, 0], sizes = [1, 128], strides = [1, 1]} : vector<8x128xf32> to vector<1x128xf32>
      %69 = arith.mulf %3, %51 : vector<1x128xf32>
      %70 = arith.addf %68, %69 : vector<1x128xf32>
      %71 = arith.mulf %5, %34 : vector<1x128xf32>
      %72 = arith.addf %70, %71 : vector<1x128xf32>
      %73 = arith.mulf %7, %59 : vector<1x128xf32>
      %74 = arith.subf %72, %73 : vector<1x128xf32>
      %75 = arith.mulf %9, %42 : vector<1x128xf32>
      %76 = arith.subf %74, %75 : vector<1x128xf32>
      %77 = arith.mulf %4, %59 : vector<1x128xf32>
      %78 = arith.addf %76, %77 : vector<1x128xf32>
      %79 = arith.mulf %6, %42 : vector<1x128xf32>
      %80 = arith.addf %78, %79 : vector<1x128xf32>
      %81 = arith.mulf %8, %67 : vector<1x128xf32>
      %82 = arith.subf %80, %81 : vector<1x128xf32>
      %83 = arith.mulf %10, %50 : vector<1x128xf32>
      %84 = arith.subf %82, %83 : vector<1x128xf32>
      %85 = vector.extract_strided_slice %33 {offsets = [3, 0], sizes = [1, 128], strides = [1, 1]} : vector<8x128xf32> to vector<1x128xf32>
      %86 = arith.mulf %3, %68 : vector<1x128xf32>
      %87 = arith.addf %85, %86 : vector<1x128xf32>
      %88 = arith.mulf %5, %51 : vector<1x128xf32>
      %89 = arith.addf %87, %88 : vector<1x128xf32>
      %90 = arith.mulf %7, %76 : vector<1x128xf32>
      %91 = arith.subf %89, %90 : vector<1x128xf32>
      %92 = arith.mulf %9, %59 : vector<1x128xf32>
      %93 = arith.subf %91, %92 : vector<1x128xf32>
      %94 = arith.mulf %4, %76 : vector<1x128xf32>
      %95 = arith.addf %93, %94 : vector<1x128xf32>
      %96 = arith.mulf %6, %59 : vector<1x128xf32>
      %97 = arith.addf %95, %96 : vector<1x128xf32>
      %98 = arith.mulf %8, %84 : vector<1x128xf32>
      %99 = arith.subf %97, %98 : vector<1x128xf32>
      %100 = arith.mulf %10, %67 : vector<1x128xf32>
      %101 = arith.subf %99, %100 : vector<1x128xf32>
      %102 = vector.extract_strided_slice %33 {offsets = [4, 0], sizes = [1, 128], strides = [1, 1]} : vector<8x128xf32> to vector<1x128xf32>
      %103 = arith.mulf %3, %85 : vector<1x128xf32>
      %104 = arith.addf %102, %103 : vector<1x128xf32>
      %105 = arith.mulf %5, %68 : vector<1x128xf32>
      %106 = arith.addf %104, %105 : vector<1x128xf32>
      %107 = arith.mulf %7, %93 : vector<1x128xf32>
      %108 = arith.subf %106, %107 : vector<1x128xf32>
      %109 = arith.mulf %9, %76 : vector<1x128xf32>
      %110 = arith.subf %108, %109 : vector<1x128xf32>
      %111 = arith.mulf %4, %93 : vector<1x128xf32>
      %112 = arith.addf %110, %111 : vector<1x128xf32>
      %113 = arith.mulf %6, %76 : vector<1x128xf32>
      %114 = arith.addf %112, %113 : vector<1x128xf32>
      %115 = arith.mulf %8, %101 : vector<1x128xf32>
      %116 = arith.subf %114, %115 : vector<1x128xf32>
      %117 = arith.mulf %10, %84 : vector<1x128xf32>
      %118 = arith.subf %116, %117 : vector<1x128xf32>
      %119 = vector.extract_strided_slice %33 {offsets = [5, 0], sizes = [1, 128], strides = [1, 1]} : vector<8x128xf32> to vector<1x128xf32>
      %120 = arith.mulf %3, %102 : vector<1x128xf32>
      %121 = arith.addf %119, %120 : vector<1x128xf32>
      %122 = arith.mulf %5, %85 : vector<1x128xf32>
      %123 = arith.addf %121, %122 : vector<1x128xf32>
      %124 = arith.mulf %7, %110 : vector<1x128xf32>
      %125 = arith.subf %123, %124 : vector<1x128xf32>
      %126 = arith.mulf %9, %93 : vector<1x128xf32>
      %127 = arith.subf %125, %126 : vector<1x128xf32>
      %128 = arith.mulf %4, %110 : vector<1x128xf32>
      %129 = arith.addf %127, %128 : vector<1x128xf32>
      %130 = arith.mulf %6, %93 : vector<1x128xf32>
      %131 = arith.addf %129, %130 : vector<1x128xf32>
      %132 = arith.mulf %8, %118 : vector<1x128xf32>
      %133 = arith.subf %131, %132 : vector<1x128xf32>
      %134 = arith.mulf %10, %101 : vector<1x128xf32>
      %135 = arith.subf %133, %134 : vector<1x128xf32>
      %136 = vector.extract_strided_slice %33 {offsets = [6, 0], sizes = [1, 128], strides = [1, 1]} : vector<8x128xf32> to vector<1x128xf32>
      %137 = arith.mulf %3, %119 : vector<1x128xf32>
      %138 = arith.addf %136, %137 : vector<1x128xf32>
      %139 = arith.mulf %5, %102 : vector<1x128xf32>
      %140 = arith.addf %138, %139 : vector<1x128xf32>
      %141 = arith.mulf %7, %127 : vector<1x128xf32>
      %142 = arith.subf %140, %141 : vector<1x128xf32>
      %143 = arith.mulf %9, %110 : vector<1x128xf32>
      %144 = arith.subf %142, %143 : vector<1x128xf32>
      %145 = arith.mulf %4, %127 : vector<1x128xf32>
      %146 = arith.addf %144, %145 : vector<1x128xf32>
      %147 = arith.mulf %6, %110 : vector<1x128xf32>
      %148 = arith.addf %146, %147 : vector<1x128xf32>
      %149 = arith.mulf %8, %135 : vector<1x128xf32>
      %150 = arith.subf %148, %149 : vector<1x128xf32>
      %151 = arith.mulf %10, %118 : vector<1x128xf32>
      %152 = arith.subf %150, %151 : vector<1x128xf32>
      %153 = vector.extract_strided_slice %33 {offsets = [7, 0], sizes = [1, 128], strides = [1, 1]} : vector<8x128xf32> to vector<1x128xf32>
      %154 = arith.mulf %3, %136 : vector<1x128xf32>
      %155 = arith.addf %153, %154 : vector<1x128xf32>
      %156 = arith.mulf %5, %119 : vector<1x128xf32>
      %157 = arith.addf %155, %156 : vector<1x128xf32>
      %158 = arith.mulf %7, %144 : vector<1x128xf32>
      %159 = arith.subf %157, %158 : vector<1x128xf32>
      %160 = arith.mulf %9, %127 : vector<1x128xf32>
      %161 = arith.subf %159, %160 : vector<1x128xf32>
      %162 = arith.mulf %4, %144 : vector<1x128xf32>
      %163 = arith.addf %161, %162 : vector<1x128xf32>
      %164 = arith.mulf %6, %127 : vector<1x128xf32>
      %165 = arith.addf %163, %164 : vector<1x128xf32>
      %166 = arith.mulf %8, %152 : vector<1x128xf32>
      %167 = arith.subf %165, %166 : vector<1x128xf32>
      %168 = arith.mulf %10, %135 : vector<1x128xf32>
      %169 = arith.subf %167, %168 : vector<1x128xf32>
      %170 = tpu.concatenate %50, %67, %84, %101, %118, %135, %152, %169 in 0 : vector<1x128xf32>, vector<1x128xf32>, vector<1x128xf32>, vector<1x128xf32>, vector<1x128xf32>, vector<1x128xf32>, vector<1x128xf32>, vector<1x128xf32> -> vector<8x128xf32>
      %171 = vector.broadcast %11 : vector<1x128xf32> to vector<8x128xf32>
      %172 = arith.mulf %171, %170 : vector<8x128xf32>
      %173 = arith.index_cast %31 : i32 to index
      %c0_52 = arith.constant 0 : index
      %174 = vector.load %arg7[%173, %c0_52] : memref<16x128xf32, #tpu.memory_space<vmem>>, vector<8x128xf32>
      tpu.vector_store %arg7[%173, %c0_52], %172 {strides = array<i32>} : memref<16x128xf32, #tpu.memory_space<vmem>>, vector<8x128xf32>,
      scf.yield %153, %161, %136, %144, %161, %169, %144, %152 : vector<1x128xf32>, vector<1x128xf32>, vector<1x128xf32>, vector<1x128xf32>, vector<1x128xf32>, vector<1x128xf32>, vector<1x128xf32>, vector<1x128xf32>
    }
    %c2_i32_34 = arith.constant 2 : i32
    %c0_35 = arith.constant 0 : index
    %c0_36 = arith.constant 0 : index
    %22 = vector.load %arg8[%c0_35, %c0_36] : memref<2x128xf32, #tpu.memory_space<vmem>>, vector<1x128xf32>
    tpu.vector_store %arg8[%c0_35, %c0_36], %21#0 {strides = array<i32>} : memref<2x128xf32, #tpu.memory_space<vmem>>, vector<1x128xf32>,
    %c0_37 = arith.constant 0 : index
    %c0_38 = arith.constant 0 : index
    %23 = vector.load %arg9[%c0_37, %c0_38] : memref<2x128xf32, #tpu.memory_space<vmem>>, vector<1x128xf32>
    tpu.vector_store %arg9[%c0_37, %c0_38], %21#2 {strides = array<i32>} : memref<2x128xf32, #tpu.memory_space<vmem>>, vector<1x128xf32>,
    %c0_39 = arith.constant 0 : index
    %c0_40 = arith.constant 0 : index
    %24 = vector.load %arg10[%c0_39, %c0_40] : memref<2x128xf32, #tpu.memory_space<vmem>>, vector<1x128xf32>
    tpu.vector_store %arg10[%c0_39, %c0_40], %21#4 {strides = array<i32>} : memref<2x128xf32, #tpu.memory_space<vmem>>, vector<1x128xf32>,
    %c0_41 = arith.constant 0 : index
    %c0_42 = arith.constant 0 : index
    %25 = vector.load %arg11[%c0_41, %c0_42] : memref<2x128xf32, #tpu.memory_space<vmem>>, vector<1x128xf32>
    tpu.vector_store %arg11[%c0_41, %c0_42], %21#6 {strides = array<i32>} : memref<2x128xf32, #tpu.memory_space<vmem>>, vector<1x128xf32>,
    %c1_43 = arith.constant 1 : index
    %c0_44 = arith.constant 0 : index
    %26 = vector.load %arg8[%c1_43, %c0_44] : memref<2x128xf32, #tpu.memory_space<vmem>>, vector<1x128xf32>
    tpu.vector_store %arg8[%c1_43, %c0_44], %21#1 {strides = array<i32>} : memref<2x128xf32, #tpu.memory_space<vmem>>, vector<1x128xf32>,
    %c1_45 = arith.constant 1 : index
    %c0_46 = arith.constant 0 : index
    %27 = vector.load %arg9[%c1_45, %c0_46] : memref<2x128xf32, #tpu.memory_space<vmem>>, vector<1x128xf32>
    tpu.vector_store %arg9[%c1_45, %c0_46], %21#3 {strides = array<i32>} : memref<2x128xf32, #tpu.memory_space<vmem>>, vector<1x128xf32>,
    %c1_47 = arith.constant 1 : index
    %c0_48 = arith.constant 0 : index
    %28 = vector.load %arg10[%c1_47, %c0_48] : memref<2x128xf32, #tpu.memory_space<vmem>>, vector<1x128xf32>
    tpu.vector_store %arg10[%c1_47, %c0_48], %21#5 {strides = array<i32>} : memref<2x128xf32, #tpu.memory_space<vmem>>, vector<1x128xf32>,
    %c1_49 = arith.constant 1 : index
    %c0_50 = arith.constant 0 : index
    %29 = vector.load %arg11[%c1_49, %c0_50] : memref<2x128xf32, #tpu.memory_space<vmem>>, vector<1x128xf32>
    tpu.vector_store %arg11[%c1_49, %c0_50], %21#7 {strides = array<i32>} : memref<2x128xf32, #tpu.memory_space<vmem>>, vector<1x128xf32>,
    return
  }
  func.func @transform_0(%arg0: i32) -> (i32, i32) {
    %c0_i32 = arith.constant 0 : i32
    %c0_i32_0 = arith.constant 0 : i32
    return %arg0, %c0_i32 : i32, i32
  }
  func.func @transform_1(%arg0: i32) -> (i32, i32) {
    %c0_i32 = arith.constant 0 : i32
    %c0_i32_0 = arith.constant 0 : i32
    %c0_i32_1 = arith.constant 0 : i32
    return %c0_i32, %c0_i32_0 : i32, i32
  }
  func.func @transform_2(%arg0: i32) -> (i32, i32) {
    %c0_i32 = arith.constant 0 : i32
    %c0_i32_0 = arith.constant 0 : i32
    %c0_i32_1 = arith.constant 0 : i32
    return %c0_i32, %c0_i32_0 : i32, i32
  }
  func.func @transform_3(%arg0: i32) -> (i32, i32) {
    %c0_i32 = arith.constant 0 : i32
    %c0_i32_0 = arith.constant 0 : i32
    %c0_i32_1 = arith.constant 0 : i32
    return %c0_i32, %c0_i32_0 : i32, i32
  }
  func.func @transform_4(%arg0: i32) -> (i32, i32) {
    %c0_i32 = arith.constant 0 : i32
    %c0_i32_0 = arith.constant 0 : i32
    %c0_i32_1 = arith.constant 0 : i32
    return %c0_i32, %c0_i32_0 : i32, i32
  }
  func.func @transform_5(%arg0: i32) -> (i32, i32) {
    %c0_i32 = arith.constant 0 : i32
    %c0_i32_0 = arith.constant 0 : i32
    %c0_i32_1 = arith.constant 0 : i32
    return %c0_i32, %c0_i32_0 : i32, i32
  }
  func.func @transform_6(%arg0: i32) -> (i32, i32) {
    %c0_i32 = arith.constant 0 : i32
    %c0_i32_0 = arith.constant 0 : i32
    return %arg0, %c0_i32 : i32, i32
  }
}

</mosaic_0001>

<llo_original>
// kernel: tpu_custom_call.1
$region0: #{tpu_custom_call.1}
  #allocation0 [shape = 'u32[]', space=smem, size = 0x4, offset = 0x4, fixed_abs, tag = 'smem constant byte address 0x4 - core index']
  #allocation1 [shape = 'u32[72,128]{1,0:T(1,128)}', space=vmem, size = 0x9000, scoped, tag = 'internal scratch']
  #allocation2 [shape = 'f32[2,128]{1,0:T(2,128)}', space=vmem, size = 0x400, scoped, tag = 'scratch operand']
  #allocation3 [shape = 'f32[2,128]{1,0:T(2,128)}', space=vmem, size = 0x400, scoped, tag = 'scratch operand']
  #allocation4 [shape = 'f32[2,128]{1,0:T(2,128)}', space=vmem, size = 0x400, scoped, tag = 'scratch operand']
  #allocation5 [shape = 'f32[2,128]{1,0:T(2,128)}', space=vmem, size = 0x400, scoped, tag = 'scratch operand']
  %s0 = inlined_call_operand.hbm [shape: f32[64,128], index: 0, kind: input, shape index: {}]
  %s1 = inlined_call_operand.hbm [shape: f32[2,128], index: 1, kind: input, shape index: {}]
  %s2 = inlined_call_operand.hbm [shape: f32[2,128], index: 2, kind: input, shape index: {}]
  %s3 = inlined_call_operand.vmem [shape: f32[2,128], index: 3, kind: input, shape index: {}]
  %s4 = inlined_call_operand.hbm [shape: f32[2,128], index: 4, kind: input, shape index: {}]
  %s5 = inlined_call_operand.vmem [shape: f32[1,128], index: 5, kind: input, shape index: {}]
  %s6 = inlined_call_operand.hbm [shape: f32[64,128], index: 6, kind: output, shape index: {}]
  %s7 = sld [smem:[#allocation0]]
  $region84: #{tpu_custom_call.1} parent=0
    _
  %s9 = ssub.s32 1, %s7
  %s10 = scalar_select 0, %s9, %s7
  $region1: #{tpu_custom_call.1} parent=0
    #allocation6 [shape = 'u8[16384]{0}', space=vmem, size = 0x4000, scoped, tag = 'input window, operand 0']
    #allocation7 [shape = 's32[2]{0}', space=sflag, size = 0x8, scoped, tag = 'scoped memory for tpu_custom_call.1']
    #allocation8 [shape = 's32[2]{0}', space=sflag, size = 0x8, scoped, tag = 'scoped memory for tpu_custom_call.1']
    #allocation9 [shape = 'u8[1024]{0}', space=vmem, size = 0x400, scoped, tag = 'input window, operand 1, single buffered']
    #allocation10 [shape = 's32[1]{0}', space=sflag, size = 0x4, scoped, tag = 'scoped memory for tpu_custom_call.1']
    #allocation11 [shape = 'u8[1024]{0}', space=vmem, size = 0x400, scoped, tag = 'input window, operand 2, single buffered']
    #allocation12 [shape = 'u8[1024]{0}', space=vmem, size = 0x400, scoped, tag = 'input window, operand 4, single buffered']
    #allocation13 [shape = 's32[1]{0}', space=sflag, size = 0x4, scoped, tag = 'scoped memory for tpu_custom_call.1']
    #allocation14 [shape = 'u8[16384]{0}', space=vmem, size = 0x4000, scoped, tag = 'output window, operand 0']
    %11 = vsyncpa [#allocation7], 0
    %s12 = scalar_lea.sflag [#allocation7], 1
    %13 = vsyncpa %s12, 0
    %14 = vsyncpa [#allocation10], 0
    %15 = vsyncpa [#allocation13], 0
    %16 = vsyncpa [#allocation8], 0
    %s17 = scalar_lea.sflag [#allocation8], 1
    %18 = vsyncpa %s17, 0
    loop: start=0, step=1, limit=6
    $region2: #{tpu_custom_call.1} parent=1 // loop_pre_header
      _
    $region3: #{tpu_custom_call.1} parent=1 // loop_header
      %s20 = sphi 0, %s24
      %p21 = scmp.ge.s32.totalorder %s20, 6
      %s30 = sphi 0, %s32
      %s33 = sphi 0, %s30
      %s34 = sphi 0, %s33
      %s50 = sphi 0, %s34
      %s54 = sphi 0, %s54
      %s56 = sphi 0, %s54
      %s57 = sphi 0, %s56
      %s71 = sphi 0, %s57
      %s75 = sphi 0, %s75
      %s77 = sphi 0, %s75
      %s78 = sphi 0, %s77
      %s92 = sphi 0, %s78
      %s96 = sphi 0, %s96
      %s98 = sphi 0, %s96
      %s99 = sphi 0, %s98
      %s113 = sphi 0, %s99
      %s117 = sphi 0, %s117
      %s119 = sphi 0, %s117
      %s120 = sphi 0, %s119
      %s134 = sphi 0, %s120
      %s138 = sphi 0, %s138
      %s140 = sphi 0, %s138
      %s141 = sphi 0, %s140
      %s155 = sphi 0, %s141
      %s161 = sphi 0, %s163
      %s164 = sphi 0, %s161
      %s165 = sphi 0, %s164
      %s181 = sphi 0, %s165
    $region4: #{tpu_custom_call.1} parent=1 // loop_header_branch
      %23 = sbr.rel (%p21) target = $region8
    $region5: #{tpu_custom_call.1} parent=1 // loop_body
      %s25 = ssub.s32 %s20, 1
      %s26 = ssub.s32 %s20, 2
      %s27 = sadd.s32 %s20, 1
      %s28 = ssub.s32 %s20, %s27
      %p29 = scmp.eq.s32.totalorder %s28, 0
      %s31 = sadd.s32 %s30, 1
      %s32 = scalar_select %p29, %s30, %s31
      %p35 = pneg %p29
      %p36 = scmp.eq.s32.totalorder %s20, 3
      %p37 = por %p35, %p36
      %p38 = scmp.ne.s32.totalorder %s30, %s33
      %p39 = scmp.eq.s32.totalorder %s20, 0
      %p40 = por %p38, %p39
      %p41 = scmp.ne.s32.totalorder %s30, %s33
      %p42 = scmp.eq.s32.totalorder %s25, 3
      %p43 = por %p41, %p42
      %p44 = scmp.ne.s32.totalorder %s33, %s34
      %p45 = scmp.eq.s32.totalorder %s25, 0
      %p46 = por %p44, %p45
      %p47 = scmp.ne.s32.totalorder %s33, %s34
      %p48 = scmp.eq.s32.totalorder %s26, 3
      %p49 = por %p47, %p48
      %p51 = scmp.ne.s32.totalorder %s34, %s50
      %p52 = scmp.eq.s32.totalorder %s26, 0
      %p53 = por %p51, %p52
      %s55 = sadd.s32 %s54, 1
      %p58 = scmp.eq.s32.totalorder %s20, 3
      %p59 = scmp.ne.s32.totalorder %s54, %s56
      %p60 = scmp.eq.s32.totalorder %s20, 0
      %p61 = por %p59, %p60
      %p62 = scmp.ne.s32.totalorder %s54, %s56
      %p63 = scmp.eq.s32.totalorder %s25, 3
      %p64 = por %p62, %p63
      %p65 = scmp.ne.s32.totalorder %s56, %s57
      %p66 = scmp.eq.s32.totalorder %s25, 0
      %p67 = por %p65, %p66
      %p68 = scmp.ne.s32.totalorder %s56, %s57
      %p69 = scmp.eq.s32.totalorder %s26, 3
      %p70 = por %p68, %p69
      %p72 = scmp.ne.s32.totalorder %s57, %s71
      %p73 = scmp.eq.s32.totalorder %s26, 0
      %p74 = por %p72, %p73
      %s76 = sadd.s32 %s75, 1
      %p79 = scmp.eq.s32.totalorder %s20, 3
      %p80 = scmp.ne.s32.totalorder %s75, %s77
      %p81 = scmp.eq.s32.totalorder %s20, 0
      %p82 = por %p80, %p81
      %p83 = scmp.ne.s32.totalorder %s75, %s77
      %p84 = scmp.eq.s32.totalorder %s25, 3
      %p85 = por %p83, %p84
      %p86 = scmp.ne.s32.totalorder %s77, %s78
      %p87 = scmp.eq.s32.totalorder %s25, 0
      %p88 = por %p86, %p87
      %p89 = scmp.ne.s32.totalorder %s77, %s78
      %p90 = scmp.eq.s32.totalorder %s26, 3
      %p91 = por %p89, %p90
      %p93 = scmp.ne.s32.totalorder %s78, %s92
      %p94 = scmp.eq.s32.totalorder %s26, 0
      %p95 = por %p93, %p94
      %s97 = sadd.s32 %s96, 1
      %p100 = scmp.eq.s32.totalorder %s20, 3
      %p101 = scmp.ne.s32.totalorder %s96, %s98
      %p102 = scmp.eq.s32.totalorder %s20, 0
      %p103 = por %p101, %p102
      %p104 = scmp.ne.s32.totalorder %s96, %s98
      %p105 = scmp.eq.s32.totalorder %s25, 3
      %p106 = por %p104, %p105
      %p107 = scmp.ne.s32.totalorder %s98, %s99
      %p108 = scmp.eq.s32.totalorder %s25, 0
      %p109 = por %p107, %p108
      %p110 = scmp.ne.s32.totalorder %s98, %s99
      %p111 = scmp.eq.s32.totalorder %s26, 3
      %p112 = por %p110, %p111
      %p114 = scmp.ne.s32.totalorder %s99, %s113
      %p115 = scmp.eq.s32.totalorder %s26, 0
      %p116 = por %p114, %p115
      %s118 = sadd.s32 %s117, 1
      %p121 = scmp.eq.s32.totalorder %s20, 3
      %p122 = scmp.ne.s32.totalorder %s117, %s119
      %p123 = scmp.eq.s32.totalorder %s20, 0
      %p124 = por %p122, %p123
      %p125 = scmp.ne.s32.totalorder %s117, %s119
      %p126 = scmp.eq.s32.totalorder %s25, 3
      %p127 = por %p125, %p126
      %p128 = scmp.ne.s32.totalorder %s119, %s120
      %p129 = scmp.eq.s32.totalorder %s25, 0
      %p130 = por %p128, %p129
      %p131 = scmp.ne.s32.totalorder %s119, %s120
      %p132 = scmp.eq.s32.totalorder %s26, 3
      %p133 = por %p131, %p132
      %p135 = scmp.ne.s32.totalorder %s120, %s134
      %p136 = scmp.eq.s32.totalorder %s26, 0
      %p137 = por %p135, %p136
      %s139 = sadd.s32 %s138, 1
      %p142 = scmp.eq.s32.totalorder %s20, 3
      %p143 = scmp.ne.s32.totalorder %s138, %s140
      %p144 = scmp.eq.s32.totalorder %s20, 0
      %p145 = por %p143, %p144
      %p146 = scmp.ne.s32.totalorder %s138, %s140
      %p147 = scmp.eq.s32.totalorder %s25, 3
      %p148 = por %p146, %p147
      %p149 = scmp.ne.s32.totalorder %s140, %s141
      %p150 = scmp.eq.s32.totalorder %s25, 0
      %p151 = por %p149, %p150
      %p152 = scmp.ne.s32.totalorder %s140, %s141
      %p153 = scmp.eq.s32.totalorder %s26, 3
      %p154 = por %p152, %p153
      %p156 = scmp.ne.s32.totalorder %s141, %s155
      %p157 = scmp.eq.s32.totalorder %s26, 0
      %p158 = por %p156, %p157
      %s159 = ssub.s32 %s20, %s27
      %p160 = scmp.eq.s32.totalorder %s159, 0
      %s162 = sadd.s32 %s161, 1
      %s163 = scalar_select %p160, %s161, %s162
      %p166 = pneg %p160
      %p167 = scmp.eq.s32.totalorder %s20, 3
      %p168 = por %p166, %p167
      %p169 = scmp.ne.s32.totalorder %s161, %s164
      %p170 = scmp.eq.s32.totalorder %s20, 0
      %p171 = por %p169, %p170
      %p172 = scmp.ne.s32.totalorder %s161, %s164
      %p173 = scmp.eq.s32.totalorder %s25, 3
      %p174 = por %p172, %p173
      %p175 = scmp.ne.s32.totalorder %s164, %s165
      %p176 = scmp.eq.s32.totalorder %s25, 0
      %p177 = por %p175, %p176
      %p178 = scmp.ne.s32.totalorder %s164, %s165
      %p179 = scmp.eq.s32.totalorder %s26, 3
      %p180 = por %p178, %p179
      %p182 = scmp.ne.s32.totalorder %s165, %s181
      %p183 = scmp.eq.s32.totalorder %s26, 0
      %p184 = por %p182, %p183
      %p185 = scmp.le.s32.totalorder 1, %s20
      %p186 = scmp.lt.s32.totalorder %s20, 5
      %p187 = pnand %p185, %p186
      %p188 = pneg %p187
      // Predicated region
      $region9: #{tpu_custom_call.1} parent=5 // pred_check
        _
      $region10: #{tpu_custom_call.1} parent=5 // pred_check_branch
        %190 = sbr.rel (%p187) target = $region12
      $region11: #{tpu_custom_call.1} parent=5 // pred_region
        %s191 = ssub.s32 %s20, 1
        // Predicated region
        $region13: #{tpu_custom_call.1} parent=11 // pred_check
          %p192 = pneg %p67
        $region14: #{tpu_custom_call.1} parent=11 // pred_check_branch
          %194 = sbr.rel (%p192) target = $region16
        $region15: #{tpu_custom_call.1} parent=11 // pred_region
          %196 = vsyncadd [#allocation10], 0
          %s198 = sshll.u32 %s1, 4
          %s199 = int_to_ptr.hbm [resolvable:$true] %s198
          %s200 = sshll.u32 [#allocation9], 4
          %s201 = int_to_ptr.vmem [resolvable:$true] %s200
          %203 = dma.hbm_to_vmem [thread:$0]  %s199, 32, %s201, [#allocation10]
        $region16: #{tpu_custom_call.1} parent=11 // pred_fallthru
          _
        // Predicated region
        $region17: #{tpu_custom_call.1} parent=11 // pred_check
          %p204 = pneg %p88
        $region18: #{tpu_custom_call.1} parent=11 // pred_check_branch
          %206 = sbr.rel (%p204) target = $region20
        $region19: #{tpu_custom_call.1} parent=11 // pred_region
          %208 = vsyncadd [#allocation10], 0
          %s210 = sshll.u32 %s2, 4
          %s211 = int_to_ptr.hbm [resolvable:$true] %s210
          %s212 = sshll.u32 [#allocation11], 4
          %s213 = int_to_ptr.vmem [resolvable:$true] %s212
          %215 = dma.hbm_to_vmem [thread:$0]  %s211, 32, %s213, [#allocation10]
        $region20: #{tpu_custom_call.1} parent=11 // pred_fallthru
          _
        // Predicated region
        $region21: #{tpu_custom_call.1} parent=11 // pred_check
          %p216 = pneg %p109
        $region22: #{tpu_custom_call.1} parent=11 // pred_check_branch
          %218 = sbr.rel (%p216) target = $region24
        $region23: #{tpu_custom_call.1} parent=11 // pred_region
          _
        $region24: #{tpu_custom_call.1} parent=11 // pred_fallthru
          _
        // Predicated region
        $region25: #{tpu_custom_call.1} parent=11 // pred_check
          %p219 = pneg %p130
        $region26: #{tpu_custom_call.1} parent=11 // pred_check_branch
          %221 = sbr.rel (%p219) target = $region28
        $region27: #{tpu_custom_call.1} parent=11 // pred_region
          %223 = vsyncadd [#allocation13], 0
          %s225 = sshll.u32 %s4, 4
          %s226 = int_to_ptr.hbm [resolvable:$true] %s225
          %s227 = sshll.u32 [#allocation12], 4
          %s228 = int_to_ptr.vmem [resolvable:$true] %s227
          %230 = dma.hbm_to_vmem [thread:$0]  %s226, 32, %s228, [#allocation13]
        $region28: #{tpu_custom_call.1} parent=11 // pred_fallthru
          _
        // Predicated region
        $region29: #{tpu_custom_call.1} parent=11 // pred_check
          %p231 = pneg %p151
        $region30: #{tpu_custom_call.1} parent=11 // pred_check_branch
          %233 = sbr.rel (%p231) target = $region32
        $region31: #{tpu_custom_call.1} parent=11 // pred_region
          _
        $region32: #{tpu_custom_call.1} parent=11 // pred_fallthru
          _
      $region12: #{tpu_custom_call.1} parent=5 // pred_fallthru
        _
      %p234 = scmp.lt.s32.totalorder %s20, 4
      // Predicated region
      $region33: #{tpu_custom_call.1} parent=5 // pred_check
        %p235 = pneg %p234
      $region34: #{tpu_custom_call.1} parent=5 // pred_check_branch
        %237 = sbr.rel (%p235) target = $region36
      $region35: #{tpu_custom_call.1} parent=5 // pred_region
        // Predicated region
        $region37: #{tpu_custom_call.1} parent=35 // pred_check
          %p238 = pneg %p40
        $region38: #{tpu_custom_call.1} parent=35 // pred_check_branch
          %240 = sbr.rel (%p238) target = $region40
        $region39: #{tpu_custom_call.1} parent=35 // pred_region
          %s241 = sand.u32 %s30, 1
          %s242 = scalar_lea.sflag [#allocation7], %s241
          %s243 = sand.u32 %s30, 1
          %s244 = smul.addr %s243, 16
          %s245 = scalar_lea.vmem [#allocation6], %s244
          %s246 = smul.u32 2, %s20
          %248 = vsyncadd %s242, 0
          %s249 = smul.addr %s246, 8
          %s250 = scalar_lea.hbm %s0, %s249
          %s251 = sshll.u32 %s250, 4
          %s252 = int_to_ptr.hbm [resolvable:$true] %s251
          %s253 = sshll.u32 %s245, 4
          %s254 = int_to_ptr.vmem [resolvable:$true] %s253
          %259 = dma.hbm_to_vmem [thread:$0]  %s252, 256, %s254, %s242, 128, 128, 8
        $region40: #{tpu_custom_call.1} parent=35 // pred_fallthru
          _
      $region36: #{tpu_custom_call.1} parent=5 // pred_fallthru
        _
      %p260 = scmp.le.s32.totalorder 1, %s20
      %p261 = scmp.lt.s32.totalorder %s20, 5
      %p262 = pnand %p260, %p261
      %p263 = pneg %p262
      // Predicated region
      $region41: #{tpu_custom_call.1} parent=5 // pred_check
        _
      $region42: #{tpu_custom_call.1} parent=5 // pred_check_branch
        %265 = sbr.rel (%p262) target = $region44
      $region43: #{tpu_custom_call.1} parent=5 // pred_region
        %s266 = ssub.s32 %s20, 1
        %s267 = sand.u32 %s33, 1
        %s268 = scalar_lea.sflag [#allocation7], %s267
        %s269 = sand.u32 %s33, 1
        %s270 = smul.addr %s269, 16
        %s271 = scalar_lea.vmem [#allocation6], %s270
        // Predicated region
        $region45: #{tpu_custom_call.1} parent=43 // pred_check
          %p272 = pneg %p46
        $region46: #{tpu_custom_call.1} parent=43 // pred_check_branch
          %274 = sbr.rel (%p272) target = $region48
        $region47: #{tpu_custom_call.1} parent=43 // pred_region
          %276 = dma.done %s268, 256
        $region48: #{tpu_custom_call.1} parent=43 // pred_fallthru
          _
        // Predicated region
        $region49: #{tpu_custom_call.1} parent=43 // pred_check
          %p277 = pneg %p67
        $region50: #{tpu_custom_call.1} parent=43 // pred_check_branch
          %279 = sbr.rel (%p277) target = $region52
        $region51: #{tpu_custom_call.1} parent=43 // pred_region
          %281 = dma.done [#allocation10], 32
        $region52: #{tpu_custom_call.1} parent=43 // pred_fallthru
          _
        // Predicated region
        $region53: #{tpu_custom_call.1} parent=43 // pred_check
          %p282 = pneg %p88
        $region54: #{tpu_custom_call.1} parent=43 // pred_check_branch
          %284 = sbr.rel (%p282) target = $region56
        $region55: #{tpu_custom_call.1} parent=43 // pred_region
          %286 = dma.done [#allocation10], 32
        $region56: #{tpu_custom_call.1} parent=43 // pred_fallthru
          _
        // Predicated region
        $region57: #{tpu_custom_call.1} parent=43 // pred_check
          %p287 = pneg %p130
        $region58: #{tpu_custom_call.1} parent=43 // pred_check_branch
          %289 = sbr.rel (%p287) target = $region60
        $region59: #{tpu_custom_call.1} parent=43 // pred_region
          %291 = dma.done [#allocation13], 32
        $region60: #{tpu_custom_call.1} parent=43 // pred_fallthru
          _
        %s292 = sand.u32 %s33, 1
        %s293 = scalar_lea.sflag [#allocation7], %s292
        %s294 = sand.u32 %s33, 1
        %s295 = smul.addr %s294, 16
        %s296 = scalar_lea.vmem [#allocation6], %s295
        %p297 = pneg %p46
        %p298 = pneg %p43
        %p299 = pneg %p67
        %p300 = pneg %p64
        %p301 = pneg %p88
        %p302 = pneg %p85
        %p303 = pneg %p109
        %p304 = pneg %p106
        %p305 = pneg %p130
        %p306 = pneg %p127
        %p307 = pneg %p151
        %p308 = pneg %p148
        %p309 = pneg %p177
        %p310 = pneg %p174
        %s311 = sand.u32 %s164, 1
        %s312 = scalar_lea.sflag [#allocation8], %s311
        %s313 = sand.u32 %s164, 1
        %s314 = smul.addr %s313, 16
        %s315 = scalar_lea.vmem [#allocation14], %s314
        %s316 = smul.u32 2, %s25
        %s317 = smul.u32 2, %s25
        %p318 = scmp.eq.s32.totalorder %s25, 0
        // Predicated region
        $region61: #{tpu_custom_call.1} parent=43 // pred_check
          %p319 = pneg %p318
        $region62: #{tpu_custom_call.1} parent=43 // pred_check_branch
          %321 = sbr.rel (%p319) target = $region64
        $region63: #{tpu_custom_call.1} parent=43 // pred_region
          %322 = vst [vmem:[#allocation2] sm:$0x3] 0.0
          %323 = vst [vmem:[#allocation3] sm:$0x3] 0.0
          %324 = vst [vmem:[#allocation4] sm:$0x3] 0.0
          %325 = vst [vmem:[#allocation5] sm:$0x3] 0.0
        $region64: #{tpu_custom_call.1} parent=43 // pred_fallthru
          _
        %v326 = vld [vmem:[#allocation9] sm:$0x1]
        %v327 = vld [vmem:[#allocation9 + $0x1] sm:$0x1]
        %v328 = vld [vmem:[#allocation11] sm:$0x1]
        %v329 = vld [vmem:[#allocation11 + $0x1] sm:$0x1]
        %v330 = vld [vmem:[%s3] sm:$0x1]
        %v331 = vld [vmem:[%s3 + $0x1] sm:$0x1]
        %v332 = vld [vmem:[#allocation12] sm:$0x1]
        %v333 = vld [vmem:[#allocation12 + $0x1] sm:$0x1]
        %v334 = vld [vmem:[%s5] sm:$0x1]
        %v335 = vld [vmem:[#allocation2] sm:$0x1]
        %v336 = vld [vmem:[#allocation2 + $0x1] sm:$0x1]
        %v337 = vld [vmem:[#allocation3] sm:$0x1]
        %v338 = vld [vmem:[#allocation3 + $0x1] sm:$0x1]
        %v339 = vld [vmem:[#allocation4] sm:$0x1]
        %v340 = vld [vmem:[#allocation4 + $0x1] sm:$0x1]
        %v341 = vld [vmem:[#allocation5] sm:$0x1]
        %v342 = vld [vmem:[#allocation5 + $0x1] sm:$0x1]
        loop: start=0, step=1, limit=2
        $region65: #{tpu_custom_call.1} parent=43 // loop_pre_header
          _
        $region66: #{tpu_custom_call.1} parent=43 // loop_header
          %s344 = sphi 0, %s348
          %p345 = scmp.ge.s32.totalorder %s344, 2
          %v349 = vphi %v335, %v725
          %v350 = vphi %v336, %v728
          %v351 = vphi %v337, %v657
          %v352 = vphi %v338, %v670
          %v353 = vphi %v339, %v728
          %v354 = vphi %v340, %v731
          %v355 = vphi %v341, %v670
          %v356 = vphi %v342, %v693
        $region67: #{tpu_custom_call.1} parent=43 // loop_header_branch
          %347 = sbr.rel (%p345) target = $region71
        $region68: #{tpu_custom_call.1} parent=43 // loop_body
          %s357 = smul.u32 %s344, 8
          %s358 = scalar_lea.vmem %s271, %s357 [#allocation6]
          %v359 = vld [vmem:[%s358] sm:$0xff]
          %v360 = vmul.f32 %v326, %v349
          %v361 = vadd.f32 %v359, %v360
          %v362 = vmul.f32 %v328, %v351
          %v363 = vadd.f32 %v361, %v362
          %v364 = vmul.f32 %v330, %v353
          %v365 = vsub.f32 %v363, %v364
          %v366 = vmul.f32 %v332, %v355
          %v367 = vsub.f32 %v365, %v366
          %v368 = vmul.f32 %v327, %v350
          %v369 = vadd.f32 %v367, %v368
          %v370 = vmul.f32 %v329, %v352
          %v371 = vadd.f32 %v369, %v370
          %v372 = vmul.f32 %v331, %v354
          %v373 = vsub.f32 %v371, %v372
          %v374 = vmul.f32 %v333, %v356
          %v375 = vsub.f32 %v373, %v374
          %v376 = vmul.f32 %v326, %v359
          %v378 = vrot.slane %v376, 7
          %v380 = vadd.f32 %v359, %v378
          %v381 = vmul.f32 %v328, %v349
          %v383 = vrot.slane %v381, 7
          %v385 = vadd.f32 %v380, %v383
          %v386 = vmul.f32 %v330, %v367
          %v388 = vrot.slane %v386, 7
          %v390 = vsub.f32 %v385, %v388
          %v391 = vmul.f32 %v332, %v353
          %v393 = vrot.slane %v391, 7
          %v395 = vsub.f32 %v390, %v393
          %v396 = vmul.f32 %v327, %v367
          %v398 = vrot.slane %v396, 7
          %v400 = vadd.f32 %v395, %v398
          %v401 = vmul.f32 %v329, %v350
          %v403 = vrot.slane %v401, 7
          %v405 = vadd.f32 %v400, %v403
          %v406 = vmul.f32 %v331, %v375
          %v408 = vrot.slane %v406, 7
          %v410 = vsub.f32 %v405, %v408
          %v411 = vmul.f32 %v333, %v354
          %v413 = vrot.slane %v411, 7
          %v415 = vsub.f32 %v410, %v413
          %v417 = vrot.slane %v359, 1
          %v419 = vmul.f32 %v326, %v417
          %v421 = vrot.slane %v419, 6
          %v423 = vadd.f32 %v359, %v421
          %v424 = vmul.f32 %v328, %v359
          %v426 = vrot.slane %v424, 6
          %v428 = vadd.f32 %v423, %v426
          %v430 = vrot.slane %v395, 1
          %v432 = vmul.f32 %v330, %v430
          %v434 = vrot.slane %v432, 6
          %v436 = vsub.f32 %v428, %v434
          %v437 = vmul.f32 %v332, %v367
          %v439 = vrot.slane %v437, 6
          %v441 = vsub.f32 %v436, %v439
          %v442 = vmul.f32 %v327, %v430
          %v444 = vrot.slane %v442, 6
          %v446 = vadd.f32 %v441, %v444
          %v447 = vmul.f32 %v329, %v367
          %v449 = vrot.slane %v447, 6
          %v451 = vadd.f32 %v446, %v449
          %v453 = vrot.slane %v415, 1
          %v455 = vmul.f32 %v331, %v453
          %v457 = vrot.slane %v455, 6
          %v459 = vsub.f32 %v451, %v457
          %v460 = vmul.f32 %v333, %v375
          %v462 = vrot.slane %v460, 6
          %v464 = vsub.f32 %v459, %v462
          %v465 = vrot.slane %v359, 2
          %v467 = vmul.f32 %v326, %v465
          %v469 = vrot.slane %v467, 5
          %v471 = vadd.f32 %v359, %v469
          %v472 = vmul.f32 %v328, %v417
          %v474 = vrot.slane %v472, 5
          %v476 = vadd.f32 %v471, %v474
          %v478 = vrot.slane %v441, 2
          %v480 = vmul.f32 %v330, %v478
          %v482 = vrot.slane %v480, 5
          %v484 = vsub.f32 %v476, %v482
          %v485 = vmul.f32 %v332, %v430
          %v487 = vrot.slane %v485, 5
          %v489 = vsub.f32 %v484, %v487
          %v490 = vmul.f32 %v327, %v478
          %v492 = vrot.slane %v490, 5
          %v494 = vadd.f32 %v489, %v492
          %v495 = vmul.f32 %v329, %v430
          %v497 = vrot.slane %v495, 5
          %v499 = vadd.f32 %v494, %v497
          %v501 = vrot.slane %v464, 2
          %v503 = vmul.f32 %v331, %v501
          %v505 = vrot.slane %v503, 5
          %v507 = vsub.f32 %v499, %v505
          %v508 = vmul.f32 %v333, %v453
          %v510 = vrot.slane %v508, 5
          %v512 = vsub.f32 %v507, %v510
          %v513 = vrot.slane %v359, 3
          %v515 = vmul.f32 %v326, %v513
          %v517 = vrot.slane %v515, 4
          %v519 = vadd.f32 %v359, %v517
          %v520 = vmul.f32 %v328, %v465
          %v522 = vrot.slane %v520, 4
          %v524 = vadd.f32 %v519, %v522
          %v526 = vrot.slane %v489, 3
          %v528 = vmul.f32 %v330, %v526
          %v530 = vrot.slane %v528, 4
          %v532 = vsub.f32 %v524, %v530
          %v533 = vmul.f32 %v332, %v478
          %v535 = vrot.slane %v533, 4
          %v537 = vsub.f32 %v532, %v535
          %v538 = vmul.f32 %v327, %v526
          %v540 = vrot.slane %v538, 4
          %v542 = vadd.f32 %v537, %v540
          %v543 = vmul.f32 %v329, %v478
          %v545 = vrot.slane %v543, 4
          %v547 = vadd.f32 %v542, %v545
          %v549 = vrot.slane %v512, 3
          %v551 = vmul.f32 %v331, %v549
          %v553 = vrot.slane %v551, 4
          %v555 = vsub.f32 %v547, %v553
          %v556 = vmul.f32 %v333, %v501
          %v558 = vrot.slane %v556, 4
          %v560 = vsub.f32 %v555, %v558
          %v561 = vrot.slane %v359, 4
          %v563 = vmul.f32 %v326, %v561
          %v565 = vrot.slane %v563, 3
          %v567 = vadd.f32 %v359, %v565
          %v568 = vmul.f32 %v328, %v513
          %v570 = vrot.slane %v568, 3
          %v572 = vadd.f32 %v567, %v570
          %v574 = vrot.slane %v537, 4
          %v576 = vmul.f32 %v330, %v574
          %v578 = vrot.slane %v576, 3
          %v580 = vsub.f32 %v572, %v578
          %v581 = vmul.f32 %v332, %v526
          %v583 = vrot.slane %v581, 3
          %v585 = vsub.f32 %v580, %v583
          %v586 = vmul.f32 %v327, %v574
          %v588 = vrot.slane %v586, 3
          %v590 = vadd.f32 %v585, %v588
          %v591 = vmul.f32 %v329, %v526
          %v593 = vrot.slane %v591, 3
          %v595 = vadd.f32 %v590, %v593
          %v597 = vrot.slane %v560, 4
          %v599 = vmul.f32 %v331, %v597
          %v601 = vrot.slane %v599, 3
          %v603 = vsub.f32 %v595, %v601
          %v604 = vmul.f32 %v333, %v549
          %v606 = vrot.slane %v604, 3
          %v608 = vsub.f32 %v603, %v606
          %v609 = vrot.slane %v359, 5
          %v611 = vmul.f32 %v326, %v609
          %v613 = vrot.slane %v611, 2
          %v615 = vadd.f32 %v359, %v613
          %v616 = vmul.f32 %v328, %v561
          %v618 = vrot.slane %v616, 2
          %v620 = vadd.f32 %v615, %v618
          %v622 = vrot.slane %v585, 5
          %v624 = vmul.f32 %v330, %v622
          %v626 = vrot.slane %v624, 2
          %v628 = vsub.f32 %v620, %v626
          %v629 = vmul.f32 %v332, %v574
          %v631 = vrot.slane %v629, 2
          %v633 = vsub.f32 %v628, %v631
          %v634 = vmul.f32 %v327, %v622
          %v636 = vrot.slane %v634, 2
          %v638 = vadd.f32 %v633, %v636
          %v639 = vmul.f32 %v329, %v574
          %v641 = vrot.slane %v639, 2
          %v643 = vadd.f32 %v638, %v641
          %v645 = vrot.slane %v608, 5
          %v647 = vmul.f32 %v331, %v645
          %v649 = vrot.slane %v647, 2
          %v651 = vsub.f32 %v643, %v649
          %v652 = vmul.f32 %v333, %v597
          %v654 = vrot.slane %v652, 2
          %v656 = vsub.f32 %v651, %v654
          %v657 = vrot.slane %v359, 6
          %v659 = vmul.f32 %v326, %v657
          %v661 = vrot.slane %v659, 1
          %v663 = vadd.f32 %v359, %v661
          %v664 = vmul.f32 %v328, %v609
          %v666 = vrot.slane %v664, 1
          %v668 = vadd.f32 %v663, %v666
          %v670 = vrot.slane %v633, 6
          %v672 = vmul.f32 %v330, %v670
          %v674 = vrot.slane %v672, 1
          %v676 = vsub.f32 %v668, %v674
          %v677 = vmul.f32 %v332, %v622
          %v679 = vrot.slane %v677, 1
          %v681 = vsub.f32 %v676, %v679
          %v682 = vmul.f32 %v327, %v670
          %v684 = vrot.slane %v682, 1
          %v686 = vadd.f32 %v681, %v684
          %v687 = vmul.f32 %v329, %v622
          %v689 = vrot.slane %v687, 1
          %v691 = vadd.f32 %v686, %v689
          %v693 = vrot.slane %v656, 6
          %v695 = vmul.f32 %v331, %v693
          %v697 = vrot.slane %v695, 1
          %v699 = vsub.f32 %v691, %v697
          %v700 = vmul.f32 %v333, %v645
          %v702 = vrot.slane %v700, 1
          %v704 = vsub.f32 %v699, %v702
          %vm705 = vcmask 1040384
          %v706 = vsel %vm705, %v375, %v415
          %vm707 = vcmask 1041408
          %v708 = vsel %vm707, %v706, %v464
          %vm709 = vcmask 1042432
          %v710 = vsel %vm709, %v708, %v512
          %vm711 = vcmask 1043456
          %v712 = vsel %vm711, %v710, %v560
          %vm713 = vcmask 1044480
          %v714 = vsel %vm713, %v712, %v608
          %vm715 = vcmask 1045504
          %v716 = vsel %vm715, %v714, %v656
          %vm717 = vcmask 1046528
          %v718 = vsel %vm717, %v716, %v704
          %v720 = vperm.slane %v334, 0
          %v722 = vmul.f32 %v720, %v718
          %s723 = scalar_lea.vmem %s315, %s357 [#allocation14]
          %724 = vst [vmem:[%s723] sm:$0xff] %v722
          %v725 = vrot.slane %v359, 7
          %v728 = vrot.slane %v681, 7
          %v731 = vrot.slane %v704, 7
        $region69: #{tpu_custom_call.1} parent=43 // loop_footer
          %s348 = sadd.s32 1, %s344
        $region70: #{tpu_custom_call.1} parent=43 // loop_footer_branch
          %343 = sbr.rel target = $region66
        $region71: #{tpu_custom_call.1} parent=43 // loop_exit
          _
        %733 = vst [vmem:[#allocation2] sm:$0x1] %v349
        %734 = vst [vmem:[#allocation3] sm:$0x1] %v351
        %735 = vst [vmem:[#allocation4] sm:$0x1] %v350
        %736 = vst [vmem:[#allocation5] sm:$0x1] %v352
        %737 = vst [vmem:[#allocation2 + $0x1] sm:$0x1] %v350
        %738 = vst [vmem:[#allocation3 + $0x1] sm:$0x1] %v352
        %739 = vst [vmem:[#allocation4 + $0x1] sm:$0x1] %v354
        %740 = vst [vmem:[#allocation5 + $0x1] sm:$0x1] %v356
        %s741 = sand.u32 %s164, 1
        %s742 = scalar_lea.sflag [#allocation8], %s741
        %s743 = sand.u32 %s164, 1
        %s744 = smul.addr %s743, 16
        %s745 = scalar_lea.vmem [#allocation14], %s744
        // Predicated region
        $region72: #{tpu_custom_call.1} parent=43 // pred_check
          %p746 = pneg %p174
        $region73: #{tpu_custom_call.1} parent=43 // pred_check_branch
          %748 = sbr.rel (%p746) target = $region75
        $region74: #{tpu_custom_call.1} parent=43 // pred_region
          %s749 = smul.u32 2, %s25
          %751 = vsyncadd %s742, 0
          %s752 = smul.addr %s749, 8
          %s753 = scalar_lea.hbm %s6, %s752
          %s754 = sshll.u32 %s745, 4
          %s755 = int_to_ptr.vmem [resolvable:$true] %s754
          %s756 = sshll.u32 %s753, 4
          %s757 = int_to_ptr.hbm [resolvable:$true] %s756
          %762 = dma.vmem_to_hbm [thread:$0]  %s755, 256, %s757, %s742, 128, 128, 8
        $region75: #{tpu_custom_call.1} parent=43 // pred_fallthru
          _
      $region44: #{tpu_custom_call.1} parent=5 // pred_fallthru
        _
      %p763 = scmp.le.s32.totalorder 2, %s20
      // Predicated region
      $region76: #{tpu_custom_call.1} parent=5 // pred_check
        %p764 = pneg %p763
      $region77: #{tpu_custom_call.1} parent=5 // pred_check_branch
        %766 = sbr.rel (%p764) target = $region79
      $region78: #{tpu_custom_call.1} parent=5 // pred_region
        %s767 = ssub.s32 %s20, 2
        // Predicated region
        $region80: #{tpu_custom_call.1} parent=78 // pred_check
          %p768 = pneg %p180
        $region81: #{tpu_custom_call.1} parent=78 // pred_check_branch
          %770 = sbr.rel (%p768) target = $region83
        $region82: #{tpu_custom_call.1} parent=78 // pred_region
          %s771 = sand.u32 %s165, 1
          %s772 = scalar_lea.sflag [#allocation8], %s771
          %s773 = sand.u32 %s165, 1
          %s774 = smul.addr %s773, 16
          %s775 = scalar_lea.vmem [#allocation14], %s774
          %777 = dma.done %s772, 256
        $region83: #{tpu_custom_call.1} parent=78 // pred_fallthru
          _
      $region79: #{tpu_custom_call.1} parent=5 // pred_fallthru
        _
    $region6: #{tpu_custom_call.1} parent=1 // loop_footer
      %s24 = sadd.s32 1, %s20
    $region7: #{tpu_custom_call.1} parent=1 // loop_footer_branch
      %19 = sbr.rel target = $region3
    $region8: #{tpu_custom_call.1} parent=1 // loop_exit
      _
    %778 = vsyncpa [#allocation7], 1
    %s779 = scalar_lea.sflag [#allocation7], 1
    %780 = vsyncpa %s779, 1
    %781 = vsyncpa [#allocation10], 1
    %782 = vsyncpa [#allocation13], 1
    %783 = vsyncpa [#allocation8], 1
    %s784 = scalar_lea.sflag [#allocation8], 1
    %785 = vsyncpa %s784, 1

</llo_original>
